<compile_context>
chip_gen: v5e
topology: v5e:2x2
jax: 0.10.0
libtpu: 0.0.40
codegen_flags: <defaults>
</compile_context>

<pallas_src>
import math

import jax
import jax.numpy as jnp
from jax.experimental import pallas as pl
from jax.experimental.pallas import tpu as pltpu


def _stack_dma_kernel(*refs):
    # refs = (x_0, ..., x_{n-1}, out, sem); all x/out refs live in HBM (pl.ANY).
    *x_refs, o_ref, sem = refs
    copies = []
    for k, x_ref in enumerate(x_refs):  # static k -> static destination slices
        cp = pltpu.make_async_copy(
            x_ref,                          # (outer, 1, inner) HBM source
            o_ref.at[:, pl.ds(k, 1), :],    # slot k of (outer, n, inner) output
            sem.at[k])
        cp.start()                          # all n DMAs are in flight at once
        copies.append(cp)
    for cp in copies:
        cp.wait()


def pallas_stack(tensors, dim: int):
    """jnp equivalent of torch.stack(tensors, dim) driven by a Pallas kernel."""
    n = len(tensors)
    if n == 0:
        raise ValueError("stack expects a non-empty sequence of tensors")

    tensors = [jnp.asarray(t) for t in tensors]
    shape = tuple(tensors[0].shape)
    dtype = tensors[0].dtype
    for t in tensors:
        if tuple(t.shape) != shape:
            raise ValueError("all tensors must have the same shape")
        if t.dtype != dtype:
            # Match torch.stack semantics exactly: no silent dtype promotion.
            raise ValueError("all tensors must have the same dtype")

    ndim = len(shape)
    if not (-(ndim + 1) <= dim <= ndim):
        raise ValueError(f"dim {dim} out of range for stacking {ndim}-D tensors")
    d = dim + ndim + 1 if dim < 0 else dim

    final_shape = shape[:d] + (n,) + shape[d:]
    outer = math.prod(shape[:d])
    inner = math.prod(shape[d:])
    itemsize = jnp.dtype(dtype).itemsize

    if outer * inner == 0:                    # empty tensors: nothing to move
        return jnp.zeros(final_shape, dtype)

    # Free row-major (outer, 1, inner) views around the insertion point.
    xs = [t.reshape(outer, 1, inner) for t in tensors]

    out3 = pl.pallas_call(
        _stack_dma_kernel,
        out_shape=jax.ShapeDtypeStruct((outer, n, inner), dtype),
        in_specs=[pl.BlockSpec(memory_space=pl.ANY)] * n,
        out_specs=pl.BlockSpec(memory_space=pl.ANY),
        scratch_shapes=[pltpu.SemaphoreType.DMA((n,))],
        cost_estimate=pl.CostEstimate(
            flops=0,
            transcendentals=0,
            bytes_accessed=2 * n * outer * inner * itemsize),
    )(*xs)

    return out3.reshape(final_shape)


class StackLayer:
    """JAX/Pallas port of pytorch_symbolic.useful_layers.StackLayer."""

    def __init__(self, dim):
        self.dim = dim

    def __call__(self, *tensors):
        return pallas_stack(tensors, self.dim)


if __name__ == "__main__":
    key = jax.random.PRNGKey(0)
    k1, k2, k3 = jax.random.split(key, 3)
    shape = (2, 4, 16, 16)
    a = jax.random.normal(k1, shape, dtype=jnp.float32)
    b = jax.random.normal(k2, shape, dtype=jnp.float32)
    c = jax.random.normal(k3, shape, dtype=jnp.float32)

    # Representative case: stack 3 tensors along dim=1.
    mod = StackLayer(1)
    y = jax.block_until_ready(mod(a, b, c))
    ref = jnp.stack([a, b, c], axis=1)
    assert y.shape == ref.shape == (2, 3, 4, 16, 16)
    assert jnp.array_equal(y, ref)

    # Exercise other insertion points (leading, middle, trailing) and 2 inputs.
    for dim in (0, 2, -1):
        yd = jax.block_until_ready(StackLayer(dim)(a, b, c))
        rd = jnp.stack([a, b, c], axis=dim)
        assert yd.shape == rd.shape
        assert jnp.array_equal(yd, rd)

    y2 = jax.block_until_ready(StackLayer(-1)(a, b))
    assert jnp.array_equal(y2, jnp.stack([a, b], axis=-1))

    print("KERNEL_OK")
</pallas_src>

<mosaic_0001>
module attributes {stable_mosaic.version = 11 : i64} {
  func.func @_stack_dma_kernel(%arg0: memref<2x1x1024xf32, #tpu.memory_space<any>>, %arg1: memref<2x1x1024xf32, #tpu.memory_space<any>>, %arg2: memref<2x1x1024xf32, #tpu.memory_space<any>>, %arg3: memref<2x3x1024xf32, #tpu.memory_space<any>>, %arg4: memref<3x!tpu.dma_semaphore, #tpu.memory_space<semaphore_mem>>) attributes {dimension_semantics = [], scalar_prefetch = 0 : i64, scratch_operands = 1 : i64, tpu.core_type = #tpu.core_type<tc>} {
    %c0_i32 = arith.constant 0 : i32
    %c0_i32_0 = arith.constant 0 : i32
    %c0_i32_1 = arith.constant 0 : i32
    %c0_i32_2 = arith.constant 0 : i32
    %0 = tpu.memref_slice %arg3[%c0_i32_0, %c0_i32_1, %c0_i32_2] : memref<2x3x1024xf32, #tpu.memory_space<any>> -> memref<2x1x1024xf32, #tpu.memory_space<any>>
    %1 = tpu.memref_slice %arg4[%c0_i32] : memref<3x!tpu.dma_semaphore, #tpu.memory_space<semaphore_mem>> -> memref<1x!tpu.dma_semaphore, #tpu.memory_space<semaphore_mem>>
    %2 = tpu.memref_squeeze %1 : memref<1x!tpu.dma_semaphore, #tpu.memory_space<semaphore_mem>> -> memref<!tpu.dma_semaphore, #tpu.memory_space<semaphore_mem>>
    tpu.enqueue_dma source(%arg0 : memref<2x1x1024xf32, #tpu.memory_space<any>>) target(%0 : memref<2x1x1024xf32, #tpu.memory_space<any>>) target_semaphore(%2 : memref<!tpu.dma_semaphore, #tpu.memory_space<semaphore_mem>>)
    %c1_i32 = arith.constant 1 : i32
    %c0_i32_3 = arith.constant 0 : i32
    %c1_i32_4 = arith.constant 1 : i32
    %c0_i32_5 = arith.constant 0 : i32
    %3 = tpu.memref_slice %arg3[%c0_i32_3, %c1_i32_4, %c0_i32_5] : memref<2x3x1024xf32, #tpu.memory_space<any>> -> memref<2x1x1024xf32, #tpu.memory_space<any>>
    %4 = tpu.memref_slice %arg4[%c1_i32] : memref<3x!tpu.dma_semaphore, #tpu.memory_space<semaphore_mem>> -> memref<1x!tpu.dma_semaphore, #tpu.memory_space<semaphore_mem>>
    %5 = tpu.memref_squeeze %4 : memref<1x!tpu.dma_semaphore, #tpu.memory_space<semaphore_mem>> -> memref<!tpu.dma_semaphore, #tpu.memory_space<semaphore_mem>>
    tpu.enqueue_dma source(%arg1 : memref<2x1x1024xf32, #tpu.memory_space<any>>) target(%3 : memref<2x1x1024xf32, #tpu.memory_space<any>>) target_semaphore(%5 : memref<!tpu.dma_semaphore, #tpu.memory_space<semaphore_mem>>)
    %c2_i32 = arith.constant 2 : i32
    %c0_i32_6 = arith.constant 0 : i32
    %c2_i32_7 = arith.constant 2 : i32
    %c0_i32_8 = arith.constant 0 : i32
    %6 = tpu.memref_slice %arg3[%c0_i32_6, %c2_i32_7, %c0_i32_8] : memref<2x3x1024xf32, #tpu.memory_space<any>> -> memref<2x1x1024xf32, #tpu.memory_space<any>>
    %7 = tpu.memref_slice %arg4[%c2_i32] : memref<3x!tpu.dma_semaphore, #tpu.memory_space<semaphore_mem>> -> memref<1x!tpu.dma_semaphore, #tpu.memory_space<semaphore_mem>>
    %8 = tpu.memref_squeeze %7 : memref<1x!tpu.dma_semaphore, #tpu.memory_space<semaphore_mem>> -> memref<!tpu.dma_semaphore, #tpu.memory_space<semaphore_mem>>
    tpu.enqueue_dma source(%arg2 : memref<2x1x1024xf32, #tpu.memory_space<any>>) target(%6 : memref<2x1x1024xf32, #tpu.memory_space<any>>) target_semaphore(%8 : memref<!tpu.dma_semaphore, #tpu.memory_space<semaphore_mem>>)
    %c0_i32_9 = arith.constant 0 : i32
    %c0_i32_10 = arith.constant 0 : i32
    %c0_i32_11 = arith.constant 0 : i32
    %c0_i32_12 = arith.constant 0 : i32
    %9 = tpu.memref_slice %arg3[%c0_i32_10, %c0_i32_11, %c0_i32_12] : memref<2x3x1024xf32, #tpu.memory_space<any>> -> memref<2x1x1024xf32, #tpu.memory_space<any>>
    %10 = tpu.memref_slice %arg4[%c0_i32_9] : memref<3x!tpu.dma_semaphore, #tpu.memory_space<semaphore_mem>> -> memref<1x!tpu.dma_semaphore, #tpu.memory_space<semaphore_mem>>
    %11 = tpu.memref_squeeze %10 : memref<1x!tpu.dma_semaphore, #tpu.memory_space<semaphore_mem>> -> memref<!tpu.dma_semaphore, #tpu.memory_space<semaphore_mem>>
    tpu.wait_dma2 semaphore(%11 : memref<!tpu.dma_semaphore, #tpu.memory_space<semaphore_mem>>) src(%arg0 : memref<2x1x1024xf32, #tpu.memory_space<any>>) dst(%9 : memref<2x1x1024xf32, #tpu.memory_space<any>>)
    %c1_i32_13 = arith.constant 1 : i32
    %c0_i32_14 = arith.constant 0 : i32
    %c1_i32_15 = arith.constant 1 : i32
    %c0_i32_16 = arith.constant 0 : i32
    %12 = tpu.memref_slice %arg3[%c0_i32_14, %c1_i32_15, %c0_i32_16] : memref<2x3x1024xf32, #tpu.memory_space<any>> -> memref<2x1x1024xf32, #tpu.memory_space<any>>
    %13 = tpu.memref_slice %arg4[%c1_i32_13] : memref<3x!tpu.dma_semaphore, #tpu.memory_space<semaphore_mem>> -> memref<1x!tpu.dma_semaphore, #tpu.memory_space<semaphore_mem>>
    %14 = tpu.memref_squeeze %13 : memref<1x!tpu.dma_semaphore, #tpu.memory_space<semaphore_mem>> -> memref<!tpu.dma_semaphore, #tpu.memory_space<semaphore_mem>>
    tpu.wait_dma2 semaphore(%14 : memref<!tpu.dma_semaphore, #tpu.memory_space<semaphore_mem>>) src(%arg1 : memref<2x1x1024xf32, #tpu.memory_space<any>>) dst(%12 : memref<2x1x1024xf32, #tpu.memory_space<any>>)
    %c2_i32_17 = arith.constant 2 : i32
    %c0_i32_18 = arith.constant 0 : i32
    %c2_i32_19 = arith.constant 2 : i32
    %c0_i32_20 = arith.constant 0 : i32
    %15 = tpu.memref_slice %arg3[%c0_i32_18, %c2_i32_19, %c0_i32_20] : memref<2x3x1024xf32, #tpu.memory_space<any>> -> memref<2x1x1024xf32, #tpu.memory_space<any>>
    %16 = tpu.memref_slice %arg4[%c2_i32_17] : memref<3x!tpu.dma_semaphore, #tpu.memory_space<semaphore_mem>> -> memref<1x!tpu.dma_semaphore, #tpu.memory_space<semaphore_mem>>
    %17 = tpu.memref_squeeze %16 : memref<1x!tpu.dma_semaphore, #tpu.memory_space<semaphore_mem>> -> memref<!tpu.dma_semaphore, #tpu.memory_space<semaphore_mem>>
    tpu.wait_dma2 semaphore(%17 : memref<!tpu.dma_semaphore, #tpu.memory_space<semaphore_mem>>) src(%arg2 : memref<2x1x1024xf32, #tpu.memory_space<any>>) dst(%15 : memref<2x1x1024xf32, #tpu.memory_space<any>>)
    return
  }
}

</mosaic_0001>

<llo_original>
// kernel: tpu_custom_call.1
$region0: #{tpu_custom_call.1}
  #allocation0 [shape = 'u32[]', space=smem, size = 0x4, offset = 0x4, fixed_abs, tag = 'smem constant byte address 0x4 - core index']
  #allocation1 [shape = 'u32[72,128]{1,0:T(1,128)}', space=vmem, size = 0x9000, scoped, tag = 'internal scratch']
  #allocation2 [shape = 's32[3]{0}', space=sflag, size = 0xc, scoped, tag = 'scratch operand']
  #allocation3 [shape = 's32[]', space=sflag, size = 0x4, offset = 0, fixed_abs, tag = 'sflag constant byte address 0x0 - dummy sync flag']
  #allocation4 [shape = 's32[]', space=sflag, size = 0x4, offset = 0, fixed_abs, tag = 'sflag constant byte address 0x0 - dummy sync flag']
  #allocation5 [shape = 's32[]', space=sflag, size = 0x4, offset = 0, fixed_abs, tag = 'sflag constant byte address 0x0 - dummy sync flag']
  %s0 = inlined_call_operand.hbm [shape: f32[2,1,1024], index: 0, kind: input, shape index: {}]
  %s1 = inlined_call_operand.hbm [shape: f32[2,1,1024], index: 1, kind: input, shape index: {}]
  %s2 = inlined_call_operand.hbm [shape: f32[2,1,1024], index: 2, kind: input, shape index: {}]
  %s3 = inlined_call_operand.vmem [shape: f32[2,3,1024], index: 3, kind: output, shape index: {}]
  %s4 = sld [smem:[#allocation0]]
  $region2: #{tpu_custom_call.1} parent=0
    _
  %s6 = ssub.s32 1, %s4
  %s7 = scalar_select 0, %s6, %s4
  %s8 = sshll.u32 %s0, 4
  %s9 = int_to_ptr.hbm [resolvable:$true] %s8
  %s10 = sshll.u32 %s3, 4
  %s11 = int_to_ptr.vmem [resolvable:$true] %s10
  %15 = dma.hbm_to_vmem [thread:$0]  %s9, 256, %s11, [#allocation2], 16, 64, 1
  %s16 = scalar_lea.vmem %s3, 1
  %s17 = scalar_lea.sflag [#allocation2], 1
  %s18 = sshll.u32 %s1, 4
  %s19 = int_to_ptr.hbm [resolvable:$true] %s18
  %s20 = sshll.u32 %s16, 4
  %s21 = int_to_ptr.vmem [resolvable:$true] %s20
  %25 = dma.hbm_to_vmem [thread:$0]  %s19, 256, %s21, %s17, 16, 64, 1
  %s26 = scalar_lea.vmem %s3, 2
  %s27 = scalar_lea.sflag [#allocation2], 2
  %s28 = sshll.u32 %s2, 4
  %s29 = int_to_ptr.hbm [resolvable:$true] %s28
  %s30 = sshll.u32 %s26, 4
  %s31 = int_to_ptr.vmem [resolvable:$true] %s30
  %35 = dma.hbm_to_vmem [thread:$0]  %s29, 256, %s31, %s27, 16, 64, 1
  %s36 = smul.u32 2, 1
  %s37 = smul.u32 %s36, 8
  %s38 = sshll.u32 %s37, 4
  %39 = dma.done [#allocation2], %s38
  %s40 = sshll.u32 %s37, 4
  %41 = dma.done %s17, %s40
  %s42 = sshll.u32 %s37, 4
  %43 = dma.done %s27, %s42
  %44 = vsyncmov [#allocation2]
  %s45 = vpop.sfrf %44
  %p46 = scmp.eq.s32.totalorder %s45, 0
  %p47 = pneg %p46
  %49 = shalt.err (%p47)
  %s50 = scalar_lea.sflag [#allocation2], 1
  %51 = vsyncmov %s50
  %s52 = vpop.sfrf %51
  %p53 = scmp.eq.s32.totalorder %s52, 0
  %p54 = pneg %p53
  %56 = shalt.err (%p54)
  %s57 = scalar_lea.sflag [#allocation2], 2
  %58 = vsyncmov %s57
  %s59 = vpop.sfrf %58
  %p60 = scmp.eq.s32.totalorder %s59, 0
  %p61 = pneg %p60
  %63 = shalt.err (%p61)

</llo_original>
